<compile_context>
chip_gen: v5e
topology: v5e:2x2
jax: 0.10.0
libtpu: 0.0.40
codegen_flags: <defaults>
</compile_context>

<pallas_src>
import jax
import jax.numpy as jnp
from jax.experimental import pallas as pl
from jax.experimental.pallas import tpu as pltpu


def _critic_kernel(xT_ref, w1_ref, b1_ref, w2_ref, b2_ref, w3_ref, b3_ref, o_ref):
    cd = w1_ref.dtype  # compute dtype for MXU operands (bf16)
    # Layer 1: (H, D) @ (D, TB) -> (H, TB); MXU, f32 accumulate.
    h1 = jnp.dot(w1_ref[...], xT_ref[...], preferred_element_type=jnp.float32)
    h1 = jnp.maximum(h1 + b1_ref[...], 0.0)          # (H,1) bias bcast over lanes
    # Layer 2: (H, H) @ (H, TB) -> (H, TB)
    h2 = jnp.dot(w2_ref[...], h1.astype(cd), preferred_element_type=jnp.float32)
    h2 = jnp.maximum(h2 + b2_ref[...], 0.0)
    # Layer 3: (1, H) @ (H, TB) -> (1, TB)  -- lane-dense row of critic values.
    out = jnp.dot(w3_ref[...], h2.astype(cd), preferred_element_type=jnp.float32)
    o_ref[...] = (out + b3_ref[0, 0]).astype(o_ref.dtype)


def centralized_critic_forward(global_state, params, *, block_b=512,
                               compute_dtype=jnp.bfloat16):
    """3-layer MLP critic. global_state: (B, D) f32. Returns (B,) f32 values."""
    w1, b1, w2, b2, w3, b3 = params        # PyTorch layout: W (out, in), b (out,)
    B, D = global_state.shape
    H = w1.shape[0]

    # Batch tiling: pad B up to a multiple of 128 so every output store is
    # lane-dense, then tile with TB <= block_b (TB always a multiple of 128).
    LANE = 128
    b_pad = max(LANE, pl.cdiv(B, LANE) * LANE)
    tb = min(block_b, b_pad)
    b_pad = pl.cdiv(b_pad, tb) * tb
    grid_b = b_pad // tb

    xT = jnp.pad(global_state, ((0, b_pad - B), (0, 0))).T.astype(compute_dtype)
    w1c = w1.astype(compute_dtype)
    w2c = w2.astype(compute_dtype)
    w3c = w3.reshape(1, H).astype(compute_dtype)
    b1c = b1.reshape(H, 1).astype(jnp.float32)
    b2c = b2.reshape(H, 1).astype(jnp.float32)
    b3c = b3.reshape(1, 1).astype(jnp.float32)

    out = pl.pallas_call(
        _critic_kernel,
        out_shape=jax.ShapeDtypeStruct((1, b_pad), jnp.float32),
        grid=(grid_b,),
        in_specs=[
            pl.BlockSpec((D, tb), lambda i: (0, i)),   # x^T tile (streamed)
            pl.BlockSpec((H, D), lambda i: (0, 0)),    # w1 (VMEM resident)
            pl.BlockSpec((H, 1), lambda i: (0, 0)),    # b1
            pl.BlockSpec((H, H), lambda i: (0, 0)),    # w2
            pl.BlockSpec((H, 1), lambda i: (0, 0)),    # b2
            pl.BlockSpec((1, H), lambda i: (0, 0)),    # w3 (row)
            pl.BlockSpec(memory_space=pltpu.MemorySpace.SMEM),  # b3 scalar
        ],
        out_specs=pl.BlockSpec((1, tb), lambda i: (0, i)),
        compiler_params=pltpu.CompilerParams(
            dimension_semantics=("parallel",)),
    )(xT, w1c, b1c, w2c, b2c, w3c, b3c)

    return out[0, :B]  # squeeze(-1) + drop batch padding


def init_params(key, global_state_dim, hidden_size):
    """Deterministic synthetic parameters in PyTorch Linear layout."""
    ks = jax.random.split(key, 6)

    def lin_init(kw, kb, fan_in, fan_out):
        bound = 1.0 / jnp.sqrt(fan_in)
        w = jax.random.uniform(kw, (fan_out, fan_in), jnp.float32, -bound, bound)
        b = jax.random.uniform(kb, (fan_out,), jnp.float32, -bound, bound)
        return w, b

    w1, b1 = lin_init(ks[0], ks[1], global_state_dim, hidden_size)
    w2, b2 = lin_init(ks[2], ks[3], hidden_size, hidden_size)
    w3, b3 = lin_init(ks[4], ks[5], hidden_size, 1)
    return (w1, b1, w2, b2, w3, b3)


def _reference(x, params, compute_dtype=jnp.bfloat16):
    """Pure-JAX reference mirroring the kernel's bf16-operand / f32-accum math."""
    w1, b1, w2, b2, w3, b3 = params
    rd = lambda a: a.astype(compute_dtype).astype(jnp.float32)
    h1 = jnp.maximum(rd(x) @ rd(w1).T + b1, 0.0)
    h2 = jnp.maximum(rd(h1) @ rd(w2).T + b2, 0.0)
    out = rd(h2) @ rd(w3).T + b3
    return out[:, 0]


if __name__ == "__main__":
    GLOBAL_STATE_DIM = 32
    HIDDEN = 128

    key = jax.random.PRNGKey(0)
    k_params, k_x1, k_x2 = jax.random.split(key, 3)
    params = init_params(k_params, GLOBAL_STATE_DIM, HIDDEN)

    # Small batch (single tile).
    x_small = jax.random.normal(k_x1, (8, GLOBAL_STATE_DIM), jnp.float32)
    v_small = jax.block_until_ready(centralized_critic_forward(x_small, params))
    assert v_small.shape == (8,)
    assert jnp.allclose(v_small, _reference(x_small, params), atol=1e-3, rtol=1e-3)

    # Larger, non-multiple-of-128 batch exercising the multi-tile pipeline.
    x_big = jax.random.normal(k_x2, (260, GLOBAL_STATE_DIM), jnp.float32)
    v_big = jax.block_until_ready(
        centralized_critic_forward(x_big, params, block_b=128))
    assert v_big.shape == (260,)
    assert jnp.allclose(v_big, _reference(x_big, params), atol=1e-3, rtol=1e-3)

    print("KERNEL_OK")
</pallas_src>

<mosaic_0001>
module attributes {stable_mosaic.version = 11 : i64} {
  func.func @_critic_kernel(%arg0: i32, %arg1: memref<32x128xbf16, #tpu.memory_space<vmem>>, %arg2: memref<128x32xbf16, #tpu.memory_space<vmem>>, %arg3: memref<128x1xf32, #tpu.memory_space<vmem>>, %arg4: memref<128x128xbf16, #tpu.memory_space<vmem>>, %arg5: memref<128x1xf32, #tpu.memory_space<vmem>>, %arg6: memref<1x128xbf16, #tpu.memory_space<vmem>>, %arg7: memref<1x1xf32, #tpu.memory_space<smem>>, %arg8: memref<1x128xf32, #tpu.memory_space<vmem>>) attributes {dimension_semantics = [#tpu.dimension_semantics<parallel>], iteration_bounds = array<i64: 1>, scalar_prefetch = 0 : i64, scratch_operands = 0 : i64, tpu.core_type = #tpu.core_type<tc>, window_params = [{transform_indices = @transform_0, window_bounds = array<i64: 32, 128>}, {pipeline_mode = #tpu.pipeline_mode<synchronous>, transform_indices = @transform_1, window_bounds = array<i64: 128, 32>}, {pipeline_mode = #tpu.pipeline_mode<synchronous>, transform_indices = @transform_2, window_bounds = array<i64: 128, 1>}, {pipeline_mode = #tpu.pipeline_mode<synchronous>, transform_indices = @transform_3, window_bounds = array<i64: 128, 128>}, {pipeline_mode = #tpu.pipeline_mode<synchronous>, transform_indices = @transform_4, window_bounds = array<i64: 128, 1>}, {pipeline_mode = #tpu.pipeline_mode<synchronous>, transform_indices = @transform_5, window_bounds = array<i64: 1, 128>}, {transform_indices = @transform_6, window_bounds = array<i64: 1, 1>}, {transform_indices = @transform_7, window_bounds = array<i64: 1, 128>}]} {
    %c0 = arith.constant 0 : index
    %c0_0 = arith.constant 0 : index
    %0 = vector.load %arg2[%c0, %c0_0] : memref<128x32xbf16, #tpu.memory_space<vmem>>, vector<128x32xbf16>
    %c0_1 = arith.constant 0 : index
    %c0_2 = arith.constant 0 : index
    %1 = vector.load %arg1[%c0_1, %c0_2] : memref<32x128xbf16, #tpu.memory_space<vmem>>, vector<32x128xbf16>
    %cst = arith.constant dense<0.000000e+00> : vector<128x128xf32>
    %2 = tpu.matmul %0, %1, %cst {dimension_numbers = #tpu.dot_dimension_numbers<[1], [0], [0], [1], [0, 0, 1, 1], [], []>} : vector<128x32xbf16>, vector<32x128xbf16>, vector<128x128xf32> -> vector<128x128xf32>
    %c0_3 = arith.constant 0 : index
    %c0_4 = arith.constant 0 : index
    %3 = vector.load %arg3[%c0_3, %c0_4] : memref<128x1xf32, #tpu.memory_space<vmem>>, vector<128x1xf32>
    %4 = vector.broadcast %3 : vector<128x1xf32> to vector<128x128xf32>
    %5 = arith.addf %2, %4 : vector<128x128xf32>
    %cst_5 = arith.constant 0.000000e+00 : f32
    %6 = vector.broadcast %cst_5 : f32 to vector<128x128xf32>
    %7 = arith.maximumf %5, %6 : vector<128x128xf32>
    %c0_6 = arith.constant 0 : index
    %c0_7 = arith.constant 0 : index
    %8 = vector.load %arg4[%c0_6, %c0_7] : memref<128x128xbf16, #tpu.memory_space<vmem>>, vector<128x128xbf16>
    %9 = arith.truncf %7 : vector<128x128xf32> to vector<128x128xbf16>
    %cst_8 = arith.constant dense<0.000000e+00> : vector<128x128xf32>
    %10 = tpu.matmul %8, %9, %cst_8 {dimension_numbers = #tpu.dot_dimension_numbers<[1], [0], [0], [1], [0, 0, 1, 1], [], []>} : vector<128x128xbf16>, vector<128x128xbf16>, vector<128x128xf32> -> vector<128x128xf32>
    %c0_9 = arith.constant 0 : index
    %c0_10 = arith.constant 0 : index
    %11 = vector.load %arg5[%c0_9, %c0_10] : memref<128x1xf32, #tpu.memory_space<vmem>>, vector<128x1xf32>
    %12 = vector.broadcast %11 : vector<128x1xf32> to vector<128x128xf32>
    %13 = arith.addf %10, %12 : vector<128x128xf32>
    %cst_11 = arith.constant 0.000000e+00 : f32
    %14 = vector.broadcast %cst_11 : f32 to vector<128x128xf32>
    %15 = arith.maximumf %13, %14 : vector<128x128xf32>
    %c0_12 = arith.constant 0 : index
    %c0_13 = arith.constant 0 : index
    %16 = vector.load %arg6[%c0_12, %c0_13] : memref<1x128xbf16, #tpu.memory_space<vmem>>, vector<1x128xbf16>
    %17 = arith.truncf %15 : vector<128x128xf32> to vector<128x128xbf16>
    %cst_14 = arith.constant dense<0.000000e+00> : vector<1x128xf32>
    %18 = tpu.matmul %16, %17, %cst_14 {dimension_numbers = #tpu.dot_dimension_numbers<[1], [0], [0], [1], [0, 0, 1, 1], [], []>} : vector<1x128xbf16>, vector<128x128xbf16>, vector<1x128xf32> -> vector<1x128xf32>
    %c0_15 = arith.constant 0 : index
    %c0_16 = arith.constant 0 : index
    %19 = memref.load %arg7[%c0_15, %c0_16] : memref<1x1xf32, #tpu.memory_space<smem>>
    %20 = vector.broadcast %19 : f32 to vector<1x128xf32>
    %21 = arith.addf %18, %20 : vector<1x128xf32>
    %c0_17 = arith.constant 0 : index
    %c0_18 = arith.constant 0 : index
    %22 = vector.load %arg8[%c0_17, %c0_18] : memref<1x128xf32, #tpu.memory_space<vmem>>, vector<1x128xf32>
    tpu.vector_store %arg8[%c0_17, %c0_18], %21 {strides = array<i32>} : memref<1x128xf32, #tpu.memory_space<vmem>>, vector<1x128xf32>,
    return
  }
  func.func @transform_0(%arg0: i32) -> (i32, i32) {
    %c0_i32 = arith.constant 0 : i32
    %c0_i32_0 = arith.constant 0 : i32
    return %c0_i32, %arg0 : i32, i32
  }
  func.func @transform_1(%arg0: i32) -> (i32, i32) {
    %c0_i32 = arith.constant 0 : i32
    %c0_i32_0 = arith.constant 0 : i32
    %c0_i32_1 = arith.constant 0 : i32
    return %c0_i32, %c0_i32_0 : i32, i32
  }
  func.func @transform_2(%arg0: i32) -> (i32, i32) {
    %c0_i32 = arith.constant 0 : i32
    %c0_i32_0 = arith.constant 0 : i32
    %c0_i32_1 = arith.constant 0 : i32
    return %c0_i32, %c0_i32_0 : i32, i32
  }
  func.func @transform_3(%arg0: i32) -> (i32, i32) {
    %c0_i32 = arith.constant 0 : i32
    %c0_i32_0 = arith.constant 0 : i32
    %c0_i32_1 = arith.constant 0 : i32
    return %c0_i32, %c0_i32_0 : i32, i32
  }
  func.func @transform_4(%arg0: i32) -> (i32, i32) {
    %c0_i32 = arith.constant 0 : i32
    %c0_i32_0 = arith.constant 0 : i32
    %c0_i32_1 = arith.constant 0 : i32
    return %c0_i32, %c0_i32_0 : i32, i32
  }
  func.func @transform_5(%arg0: i32) -> (i32, i32) {
    %c0_i32 = arith.constant 0 : i32
    %c0_i32_0 = arith.constant 0 : i32
    %c0_i32_1 = arith.constant 0 : i32
    return %c0_i32, %c0_i32_0 : i32, i32
  }
  func.func @transform_6(%arg0: i32) -> (i32, i32) {
    %c0_i32 = arith.constant 0 : i32
    %c0_i32_0 = arith.constant 0 : i32
    %c0_i32_1 = arith.constant 0 : i32
    return %c0_i32, %c0_i32_0 : i32, i32
  }
  func.func @transform_7(%arg0: i32) -> (i32, i32) {
    %c0_i32 = arith.constant 0 : i32
    %c0_i32_0 = arith.constant 0 : i32
    return %c0_i32, %arg0 : i32, i32
  }
}

</mosaic_0001>

<llo_original>
// kernel: tpu_custom_call.1
$region0: #{tpu_custom_call.1}
  #allocation0 [shape = 'u32[]', space=smem, size = 0x4, offset = 0x4, fixed_abs, tag = 'smem constant byte address 0x4 - core index']
  #allocation1 [shape = 'u32[72,128]{1,0:T(1,128)}', space=vmem, size = 0x9000, scoped, tag = 'internal scratch']
  #allocation2 [shape = 'f32[1,1]{1,0:T(1,128)S(6)}', space=smem, size = 0x200, scoped, tag = 'scoped memory for tpu_custom_call.1']
  %s0 = inlined_call_operand.vmem [shape: bf16[32,128], index: 0, kind: input, shape index: {}]
  %s1 = inlined_call_operand.vmem [shape: bf16[128,32], index: 1, kind: input, shape index: {}]
  %s2 = inlined_call_operand.vmem [shape: f32[128,1], index: 2, kind: input, shape index: {}]
  %s3 = inlined_call_operand.vmem [shape: bf16[128,128], index: 3, kind: input, shape index: {}]
  %s4 = inlined_call_operand.vmem [shape: f32[128,1], index: 4, kind: input, shape index: {}]
  %s5 = inlined_call_operand.vmem [shape: bf16[1,128], index: 5, kind: input, shape index: {}]
  %s6 = inlined_call_operand.<no memory space> [shape: f32[1,1], index: 6, kind: input, shape index: {}]
  %s7 = inlined_call_operand.hbm [shape: f32[1,128], index: 7, kind: output, shape index: {}]
  %s8 = sld [smem:[#allocation0]]
  $region38: #{tpu_custom_call.1} parent=0
    _
  %s10 = ssub.s32 1, %s8
  %s11 = scalar_select 0, %s10, %s8
  %12 = sst [smem:[#allocation2]] %s6
  $region1: #{tpu_custom_call.1} parent=0
    #allocation3 [shape = 'u8[512]{0}', space=vmem, size = 0x400, scoped, tag = 'output window, operand 0, single buffered']
    #allocation4 [shape = 's32[1]{0}', space=sflag, size = 0x4, scoped, tag = 'scoped memory for tpu_custom_call.1']
    %13 = vsyncpa [#allocation4], 0
    // Predicated region
    $region2: #{tpu_custom_call.1} parent=1 // pred_check
      _
    $region3: #{tpu_custom_call.1} parent=1 // pred_check_branch
      %15 = sbr.rel (0) target = $region5
    $region4: #{tpu_custom_call.1} parent=1 // pred_region
      _
    $region5: #{tpu_custom_call.1} parent=1 // pred_fallthru
      _
    // Predicated region
    $region6: #{tpu_custom_call.1} parent=1 // pred_check
      _
    $region7: #{tpu_custom_call.1} parent=1 // pred_check_branch
      %17 = sbr.rel (0) target = $region9
    $region8: #{tpu_custom_call.1} parent=1 // pred_region
      _
    $region9: #{tpu_custom_call.1} parent=1 // pred_fallthru
      _
    // Predicated region
    $region10: #{tpu_custom_call.1} parent=1 // pred_check
      _
    $region11: #{tpu_custom_call.1} parent=1 // pred_check_branch
      %19 = sbr.rel (0) target = $region13
    $region12: #{tpu_custom_call.1} parent=1 // pred_region
      _
    $region13: #{tpu_custom_call.1} parent=1 // pred_fallthru
      _
    // Predicated region
    $region14: #{tpu_custom_call.1} parent=1 // pred_check
      _
    $region15: #{tpu_custom_call.1} parent=1 // pred_check_branch
      %21 = sbr.rel (0) target = $region17
    $region16: #{tpu_custom_call.1} parent=1 // pred_region
      _
    $region17: #{tpu_custom_call.1} parent=1 // pred_fallthru
      _
    // Predicated region
    $region18: #{tpu_custom_call.1} parent=1 // pred_check
      _
    $region19: #{tpu_custom_call.1} parent=1 // pred_check_branch
      %23 = sbr.rel (0) target = $region21
    $region20: #{tpu_custom_call.1} parent=1 // pred_region
      _
    $region21: #{tpu_custom_call.1} parent=1 // pred_fallthru
      _
    // Predicated region
    $region22: #{tpu_custom_call.1} parent=1 // pred_check
      _
    $region23: #{tpu_custom_call.1} parent=1 // pred_check_branch
      %25 = sbr.rel (0) target = $region25
    $region24: #{tpu_custom_call.1} parent=1 // pred_region
      _
    $region25: #{tpu_custom_call.1} parent=1 // pred_fallthru
      _
    // Predicated region
    $region26: #{tpu_custom_call.1} parent=1 // pred_check
      _
    $region27: #{tpu_custom_call.1} parent=1 // pred_check_branch
      %27 = sbr.rel (0) target = $region29
    $region28: #{tpu_custom_call.1} parent=1 // pred_region
      _
    $region29: #{tpu_custom_call.1} parent=1 // pred_fallthru
      _
    %v29 = vld [vmem:[%s1] sm:$0xf]
    %v30 = vld [vmem:[%s1 + $0x4] sm:$0xf]
    %v31 = vld [vmem:[%s1 + $0x8] sm:$0xf]
    %v32 = vld [vmem:[%s1 + $0xc] sm:$0xf]
    %v33 = vld [vmem:[%s1 + $0x10] sm:$0xf]
    %v34 = vld [vmem:[%s1 + $0x14] sm:$0xf]
    %v35 = vld [vmem:[%s1 + $0x18] sm:$0xf]
    %v36 = vld [vmem:[%s1 + $0x1c] sm:$0xf]
    %v37 = vld [vmem:[%s1 + $0x20] sm:$0xf]
    %v38 = vld [vmem:[%s1 + $0x24] sm:$0xf]
    %v39 = vld [vmem:[%s1 + $0x28] sm:$0xf]
    %v40 = vld [vmem:[%s1 + $0x2c] sm:$0xf]
    %v41 = vld [vmem:[%s1 + $0x30] sm:$0xf]
    %v42 = vld [vmem:[%s1 + $0x34] sm:$0xf]
    %v43 = vld [vmem:[%s1 + $0x38] sm:$0xf]
    %v44 = vld [vmem:[%s1 + $0x3c] sm:$0xf]
    %v45 = vld [vmem:[%s0] sm:$0xf]
    %v46 = vld [vmem:[%s0 + $0x4] sm:$0xf]
    %v47 = vld [vmem:[%s0 + $0x8] sm:$0xf]
    %v48 = vld [vmem:[%s0 + $0xc] sm:$0xf]
    %v49 = vld [vmem:[%s2] sm:$0xff]
    %v50 = vld [vmem:[%s2 + $0x8] sm:$0xff]
    %v51 = vld [vmem:[%s2 + $0x10] sm:$0xff]
    %v52 = vld [vmem:[%s2 + $0x18] sm:$0xff]
    %v53 = vld [vmem:[%s2 + $0x20] sm:$0xff]
    %v54 = vld [vmem:[%s2 + $0x28] sm:$0xff]
    %v55 = vld [vmem:[%s2 + $0x30] sm:$0xff]
    %v56 = vld [vmem:[%s2 + $0x38] sm:$0xff]
    %v57 = vld [vmem:[%s2 + $0x40] sm:$0xff]
    %v58 = vld [vmem:[%s2 + $0x48] sm:$0xff]
    %v59 = vld [vmem:[%s2 + $0x50] sm:$0xff]
    %v60 = vld [vmem:[%s2 + $0x58] sm:$0xff]
    %v61 = vld [vmem:[%s2 + $0x60] sm:$0xff]
    %v62 = vld [vmem:[%s2 + $0x68] sm:$0xff]
    %v63 = vld [vmem:[%s2 + $0x70] sm:$0xff]
    %v64 = vld [vmem:[%s2 + $0x78] sm:$0xff]
    %66 = vset.pattern.permute.xlu0 0
    %67 = vperm.xlu0 %66, %v49
    %v68 = vpop.permute.xlu0 %67
    %71 = vset.pattern.permute.xlu0 0
    %72 = vperm.xlu0 %71, %v50
    %v73 = vpop.permute.xlu0 %72
    %76 = vset.pattern.permute.xlu0 0
    %77 = vperm.xlu0 %76, %v51
    %v78 = vpop.permute.xlu0 %77
    %81 = vset.pattern.permute.xlu0 0
    %82 = vperm.xlu0 %81, %v52
    %v83 = vpop.permute.xlu0 %82
    %86 = vset.pattern.permute.xlu0 0
    %87 = vperm.xlu0 %86, %v53
    %v88 = vpop.permute.xlu0 %87
    %91 = vset.pattern.permute.xlu0 0
    %92 = vperm.xlu0 %91, %v54
    %v93 = vpop.permute.xlu0 %92
    %96 = vset.pattern.permute.xlu0 0
    %97 = vperm.xlu0 %96, %v55
    %v98 = vpop.permute.xlu0 %97
    %101 = vset.pattern.permute.xlu0 0
    %102 = vperm.xlu0 %101, %v56
    %v103 = vpop.permute.xlu0 %102
    %106 = vset.pattern.permute.xlu0 0
    %107 = vperm.xlu0 %106, %v57
    %v108 = vpop.permute.xlu0 %107
    %111 = vset.pattern.permute.xlu0 0
    %112 = vperm.xlu0 %111, %v58
    %v113 = vpop.permute.xlu0 %112
    %116 = vset.pattern.permute.xlu0 0
    %117 = vperm.xlu0 %116, %v59
    %v118 = vpop.permute.xlu0 %117
    %121 = vset.pattern.permute.xlu0 0
    %122 = vperm.xlu0 %121, %v60
    %v123 = vpop.permute.xlu0 %122
    %126 = vset.pattern.permute.xlu0 0
    %127 = vperm.xlu0 %126, %v61
    %v128 = vpop.permute.xlu0 %127
    %131 = vset.pattern.permute.xlu0 0
    %132 = vperm.xlu0 %131, %v62
    %v133 = vpop.permute.xlu0 %132
    %136 = vset.pattern.permute.xlu0 0
    %137 = vperm.xlu0 %136, %v63
    %v138 = vpop.permute.xlu0 %137
    %141 = vset.pattern.permute.xlu0 0
    %142 = vperm.xlu0 %141, %v64
    %v143 = vpop.permute.xlu0 %142
    %v161 = vunpack.c.l.b16 %v29
    %v162 = vunpack.c.l.b16 %v30
    %v163 = vunpack.c.l.b16 %v31
    %v164 = vunpack.c.l.b16 %v32
    %v165 = vunpack.c.l.b16 %v33
    %v166 = vunpack.c.l.b16 %v34
    %v167 = vunpack.c.l.b16 %v35
    %v168 = vunpack.c.l.b16 %v36
    %v169 = vunpack.c.l.b16 %v37
    %v170 = vunpack.c.l.b16 %v38
    %v171 = vunpack.c.l.b16 %v39
    %v172 = vunpack.c.l.b16 %v40
    %v173 = vunpack.c.l.b16 %v41
    %v174 = vunpack.c.l.b16 %v42
    %v175 = vunpack.c.l.b16 %v43
    %v176 = vunpack.c.l.b16 %v44
    %v177 = vpack.c.b16 %v162, %v161
    %v178 = vpack.c.b16 %v164, %v163
    %v179 = vpack.c.b16 %v166, %v165
    %v180 = vpack.c.b16 %v168, %v167
    %v181 = vpack.c.b16 %v170, %v169
    %v182 = vpack.c.b16 %v172, %v171
    %v183 = vpack.c.b16 %v174, %v173
    %v184 = vpack.c.b16 %v176, %v175
    %v189 = vunpack.c.l.b16 %v45
    %v190 = vunpack.c.l.b16 %v46
    %v191 = vunpack.c.l.b16 %v47
    %v192 = vunpack.c.l.b16 %v48
    %v193 = vpack.c.b16 %v190, %v189
    %v194 = vpack.c.b16 %v192, %v191
    %vm197 = vcmask 261120
    %v199 = vsel %vm197, %v177, 0
    %v202 = vsel %vm197, %v178, 0
    %v205 = vsel %vm197, %v179, 0
    %v208 = vsel %vm197, %v180, 0
    %v211 = vsel %vm197, %v181, 0
    %v214 = vsel %vm197, %v182, 0
    %v217 = vsel %vm197, %v183, 0
    %v220 = vsel %vm197, %v184, 0
    %222 = vmatpush.bf16.msra.mxu0 0
    %223 = vmatpush.bf16.msra.mxu0 0
    %224 = vmatpush.bf16.msra.mxu0 0
    %225 = vmatpush.bf16.msra.mxu0 0
    %226 = vmatpush.bf16.msra.mxu0 0
    %227 = vmatpush.bf16.msra.mxu0 0
    %228 = vmatpush.bf16.msra.mxu0 %v194
    %229 = vmatpush.bf16.msra.mxu0 %v193
    %230 = vmatmul.bf16.gmra.mxu0 %v199
    %v231 = vpop.f32.mrf.mxu0
    %v232 = vadd.f32 %v68, %v231
    %v233 = vpop.f32.mrf.mxu0
    %v234 = vadd.f32 %v73, %v233
    %235 = vmatmul.bf16.gmra.mxu0 %v202
    %v236 = vpop.f32.mrf.mxu0
    %v237 = vadd.f32 %v78, %v236
    %v238 = vpop.f32.mrf.mxu0
    %v239 = vadd.f32 %v83, %v238
    %240 = vmatmul.bf16.gmra.mxu0 %v205
    %v241 = vpop.f32.mrf.mxu0
    %v242 = vadd.f32 %v88, %v241
    %v243 = vpop.f32.mrf.mxu0
    %v244 = vadd.f32 %v93, %v243
    %245 = vmatmul.bf16.gmra.mxu0 %v208
    %v246 = vpop.f32.mrf.mxu0
    %v247 = vadd.f32 %v98, %v246
    %v248 = vpop.f32.mrf.mxu0
    %v249 = vadd.f32 %v103, %v248
    %250 = vmatmul.bf16.gmra.mxu0 %v211
    %v251 = vpop.f32.mrf.mxu0
    %v252 = vadd.f32 %v108, %v251
    %v253 = vpop.f32.mrf.mxu0
    %v254 = vadd.f32 %v113, %v253
    %255 = vmatmul.bf16.gmra.mxu0 %v214
    %v256 = vpop.f32.mrf.mxu0
    %v257 = vadd.f32 %v118, %v256
    %v258 = vpop.f32.mrf.mxu0
    %v259 = vadd.f32 %v123, %v258
    %260 = vmatmul.bf16.gmra.mxu0 %v217
    %v261 = vpop.f32.mrf.mxu0
    %v262 = vadd.f32 %v128, %v261
    %v263 = vpop.f32.mrf.mxu0
    %v264 = vadd.f32 %v133, %v263
    %265 = vmatmul.bf16.gmra.mxu0 %v220
    %v266 = vpop.f32.mrf.mxu0
    %v267 = vadd.f32 %v138, %v266
    %v268 = vpop.f32.mrf.mxu0
    %v269 = vadd.f32 %v143, %v268
    %270 = vdwg.mxu0
    %v271 = vmax.f32 %v232, 0.0
    %v272 = vmax.f32 %v234, 0.0
    %v273 = vmax.f32 %v237, 0.0
    %v274 = vmax.f32 %v239, 0.0
    %v275 = vmax.f32 %v242, 0.0
    %v276 = vmax.f32 %v244, 0.0
    %v277 = vmax.f32 %v247, 0.0
    %v278 = vmax.f32 %v249, 0.0
    %v279 = vmax.f32 %v252, 0.0
    %v280 = vmax.f32 %v254, 0.0
    %v281 = vmax.f32 %v257, 0.0
    %v282 = vmax.f32 %v259, 0.0
    %v283 = vmax.f32 %v262, 0.0
    %v284 = vmax.f32 %v264, 0.0
    %v285 = vmax.f32 %v267, 0.0
    %v286 = vmax.f32 %v269, 0.0
    %v287 = vld [vmem:[%s3] sm:$0xf]
    %v288 = vld [vmem:[%s3 + $0x4] sm:$0xf]
    %v289 = vld [vmem:[%s3 + $0x8] sm:$0xf]
    %v290 = vld [vmem:[%s3 + $0xc] sm:$0xf]
    %v291 = vld [vmem:[%s3 + $0x10] sm:$0xf]
    %v292 = vld [vmem:[%s3 + $0x14] sm:$0xf]
    %v293 = vld [vmem:[%s3 + $0x18] sm:$0xf]
    %v294 = vld [vmem:[%s3 + $0x1c] sm:$0xf]
    %v295 = vld [vmem:[%s3 + $0x20] sm:$0xf]
    %v296 = vld [vmem:[%s3 + $0x24] sm:$0xf]
    %v297 = vld [vmem:[%s3 + $0x28] sm:$0xf]
    %v298 = vld [vmem:[%s3 + $0x2c] sm:$0xf]
    %v299 = vld [vmem:[%s3 + $0x30] sm:$0xf]
    %v300 = vld [vmem:[%s3 + $0x34] sm:$0xf]
    %v301 = vld [vmem:[%s3 + $0x38] sm:$0xf]
    %v302 = vld [vmem:[%s3 + $0x3c] sm:$0xf]
    %v303 = vpack.c.bf16 %v272, %v271
    %v304 = vpack.c.bf16 %v274, %v273
    %v305 = vpack.c.bf16 %v276, %v275
    %v306 = vpack.c.bf16 %v278, %v277
    %v307 = vpack.c.bf16 %v280, %v279
    %v308 = vpack.c.bf16 %v282, %v281
    %v309 = vpack.c.bf16 %v284, %v283
    %v310 = vpack.c.bf16 %v286, %v285
    %v311 = vld [vmem:[%s4] sm:$0xff]
    %v312 = vld [vmem:[%s4 + $0x8] sm:$0xff]
    %v313 = vld [vmem:[%s4 + $0x10] sm:$0xff]
    %v314 = vld [vmem:[%s4 + $0x18] sm:$0xff]
    %v315 = vld [vmem:[%s4 + $0x20] sm:$0xff]
    %v316 = vld [vmem:[%s4 + $0x28] sm:$0xff]
    %v317 = vld [vmem:[%s4 + $0x30] sm:$0xff]
    %v318 = vld [vmem:[%s4 + $0x38] sm:$0xff]
    %v319 = vld [vmem:[%s4 + $0x40] sm:$0xff]
    %v320 = vld [vmem:[%s4 + $0x48] sm:$0xff]
    %v321 = vld [vmem:[%s4 + $0x50] sm:$0xff]
    %v322 = vld [vmem:[%s4 + $0x58] sm:$0xff]
    %v323 = vld [vmem:[%s4 + $0x60] sm:$0xff]
    %v324 = vld [vmem:[%s4 + $0x68] sm:$0xff]
    %v325 = vld [vmem:[%s4 + $0x70] sm:$0xff]
    %v326 = vld [vmem:[%s4 + $0x78] sm:$0xff]
    %328 = vset.pattern.permute.xlu0 0
    %329 = vperm.xlu0 %328, %v311
    %v330 = vpop.permute.xlu0 %329
    %333 = vset.pattern.permute.xlu0 0
    %334 = vperm.xlu0 %333, %v312
    %v335 = vpop.permute.xlu0 %334
    %338 = vset.pattern.permute.xlu0 0
    %339 = vperm.xlu0 %338, %v313
    %v340 = vpop.permute.xlu0 %339
    %343 = vset.pattern.permute.xlu0 0
    %344 = vperm.xlu0 %343, %v314
    %v345 = vpop.permute.xlu0 %344
    %348 = vset.pattern.permute.xlu0 0
    %349 = vperm.xlu0 %348, %v315
    %v350 = vpop.permute.xlu0 %349
    %353 = vset.pattern.permute.xlu0 0
    %354 = vperm.xlu0 %353, %v316
    %v355 = vpop.permute.xlu0 %354
    %358 = vset.pattern.permute.xlu0 0
    %359 = vperm.xlu0 %358, %v317
    %v360 = vpop.permute.xlu0 %359
    %363 = vset.pattern.permute.xlu0 0
    %364 = vperm.xlu0 %363, %v318
    %v365 = vpop.permute.xlu0 %364
    %368 = vset.pattern.permute.xlu0 0
    %369 = vperm.xlu0 %368, %v319
    %v370 = vpop.permute.xlu0 %369
    %373 = vset.pattern.permute.xlu0 0
    %374 = vperm.xlu0 %373, %v320
    %v375 = vpop.permute.xlu0 %374
    %378 = vset.pattern.permute.xlu0 0
    %379 = vperm.xlu0 %378, %v321
    %v380 = vpop.permute.xlu0 %379
    %383 = vset.pattern.permute.xlu0 0
    %384 = vperm.xlu0 %383, %v322
    %v385 = vpop.permute.xlu0 %384
    %388 = vset.pattern.permute.xlu0 0
    %389 = vperm.xlu0 %388, %v323
    %v390 = vpop.permute.xlu0 %389
    %393 = vset.pattern.permute.xlu0 0
    %394 = vperm.xlu0 %393, %v324
    %v395 = vpop.permute.xlu0 %394
    %398 = vset.pattern.permute.xlu0 0
    %399 = vperm.xlu0 %398, %v325
    %v400 = vpop.permute.xlu0 %399
    %403 = vset.pattern.permute.xlu0 0
    %404 = vperm.xlu0 %403, %v326
    %v405 = vpop.permute.xlu0 %404
    %v423 = vunpack.c.l.b16 %v287
    %v424 = vunpack.c.l.b16 %v288
    %v425 = vunpack.c.l.b16 %v289
    %v426 = vunpack.c.l.b16 %v290
    %v427 = vunpack.c.l.b16 %v291
    %v428 = vunpack.c.l.b16 %v292
    %v429 = vunpack.c.l.b16 %v293
    %v430 = vunpack.c.l.b16 %v294
    %v431 = vunpack.c.l.b16 %v295
    %v432 = vunpack.c.l.b16 %v296
    %v433 = vunpack.c.l.b16 %v297
    %v434 = vunpack.c.l.b16 %v298
    %v435 = vunpack.c.l.b16 %v299
    %v436 = vunpack.c.l.b16 %v300
    %v437 = vunpack.c.l.b16 %v301
    %v438 = vunpack.c.l.b16 %v302
    %v439 = vpack.c.b16 %v424, %v423
    %v440 = vpack.c.b16 %v426, %v425
    %v441 = vpack.c.b16 %v428, %v427
    %v442 = vpack.c.b16 %v430, %v429
    %v443 = vpack.c.b16 %v432, %v431
    %v444 = vpack.c.b16 %v434, %v433
    %v445 = vpack.c.b16 %v436, %v435
    %v446 = vpack.c.b16 %v438, %v437
    %455 = vmatpush.bf16.msra.mxu0 %v310
    %456 = vmatpush.bf16.msra.mxu0 %v309
    %457 = vmatpush.bf16.msra.mxu0 %v308
    %458 = vmatpush.bf16.msra.mxu0 %v307
    %459 = vmatpush.bf16.msra.mxu0 %v306
    %460 = vmatpush.bf16.msra.mxu0 %v305
    %461 = vmatpush.bf16.msra.mxu0 %v304
    %462 = vmatpush.bf16.msra.mxu0 %v303
    %463 = vmatmul.bf16.gmra.mxu0 %v439
    %v464 = vpop.f32.mrf.mxu0
    %v465 = vadd.f32 %v330, %v464
    %v466 = vpop.f32.mrf.mxu0
    %v467 = vadd.f32 %v335, %v466
    %468 = vmatmul.bf16.gmra.mxu0 %v440
    %v469 = vpop.f32.mrf.mxu0
    %v470 = vadd.f32 %v340, %v469
    %v471 = vpop.f32.mrf.mxu0
    %v472 = vadd.f32 %v345, %v471
    %473 = vmatmul.bf16.gmra.mxu0 %v441
    %v474 = vpop.f32.mrf.mxu0
    %v475 = vadd.f32 %v350, %v474
    %v476 = vpop.f32.mrf.mxu0
    %v477 = vadd.f32 %v355, %v476
    %478 = vmatmul.bf16.gmra.mxu0 %v442
    %v479 = vpop.f32.mrf.mxu0
    %v480 = vadd.f32 %v360, %v479
    %v481 = vpop.f32.mrf.mxu0
    %v482 = vadd.f32 %v365, %v481
    %483 = vmatmul.bf16.gmra.mxu0 %v443
    %v484 = vpop.f32.mrf.mxu0
    %v485 = vadd.f32 %v370, %v484
    %v486 = vpop.f32.mrf.mxu0
    %v487 = vadd.f32 %v375, %v486
    %488 = vmatmul.bf16.gmra.mxu0 %v444
    %v489 = vpop.f32.mrf.mxu0
    %v490 = vadd.f32 %v380, %v489
    %v491 = vpop.f32.mrf.mxu0
    %v492 = vadd.f32 %v385, %v491
    %493 = vmatmul.bf16.gmra.mxu0 %v445
    %v494 = vpop.f32.mrf.mxu0
    %v495 = vadd.f32 %v390, %v494
    %v496 = vpop.f32.mrf.mxu0
    %v497 = vadd.f32 %v395, %v496
    %498 = vmatmul.bf16.gmra.mxu0 %v446
    %v499 = vpop.f32.mrf.mxu0
    %v500 = vadd.f32 %v400, %v499
    %v501 = vpop.f32.mrf.mxu0
    %v502 = vadd.f32 %v405, %v501
    %503 = vdwg.mxu0
    %v504 = vmax.f32 %v465, 0.0
    %v505 = vmax.f32 %v467, 0.0
    %v506 = vmax.f32 %v470, 0.0
    %v507 = vmax.f32 %v472, 0.0
    %v508 = vmax.f32 %v475, 0.0
    %v509 = vmax.f32 %v477, 0.0
    %v510 = vmax.f32 %v480, 0.0
    %v511 = vmax.f32 %v482, 0.0
    %v512 = vmax.f32 %v485, 0.0
    %v513 = vmax.f32 %v487, 0.0
    %v514 = vmax.f32 %v490, 0.0
    %v515 = vmax.f32 %v492, 0.0
    %v516 = vmax.f32 %v495, 0.0
    %v517 = vmax.f32 %v497, 0.0
    %v518 = vmax.f32 %v500, 0.0
    %v519 = vmax.f32 %v502, 0.0
    %v520 = vld [vmem:[%s5] sm:$0x1]
    %v521 = vpack.c.bf16 %v505, %v504
    %v522 = vpack.c.bf16 %v507, %v506
    %v523 = vpack.c.bf16 %v509, %v508
    %v524 = vpack.c.bf16 %v511, %v510
    %v525 = vpack.c.bf16 %v513, %v512
    %v526 = vpack.c.bf16 %v515, %v514
    %v527 = vpack.c.bf16 %v517, %v516
    %v528 = vpack.c.bf16 %v519, %v518
    %s529 = sld [smem:[#allocation2]]
    %v530 = vstv %s529
    %531 = vmatpush.bf16.msra.mxu0 %v528
    %532 = vmatpush.bf16.msra.mxu0 %v527
    %533 = vmatpush.bf16.msra.mxu0 %v526
    %534 = vmatpush.bf16.msra.mxu0 %v525
    %535 = vmatpush.bf16.msra.mxu0 %v524
    %536 = vmatpush.bf16.msra.mxu0 %v523
    %537 = vmatpush.bf16.msra.mxu0 %v522
    %538 = vmatpush.bf16.msra.mxu0 %v521
    %539 = vmatmul.bf16.gmra.mxu0 %v520
    %v540 = vpop.f32.mrf.mxu0
    %v541 = vadd.f32 %v530, %v540
    %v542 = vpop.f32.mrf.mxu0
    %543 = vdwg.mxu0
    %544 = vst [vmem:[#allocation3] sm:$0x1] %v541
    // Predicated region
    $region30: #{tpu_custom_call.1} parent=1 // pred_check
      _
    $region31: #{tpu_custom_call.1} parent=1 // pred_check_branch
      %546 = sbr.rel (0) target = $region33
    $region32: #{tpu_custom_call.1} parent=1 // pred_region
      %548 = vsyncadd [#allocation4], 0
      %s550 = sshll.u32 [#allocation3], 4
      %s551 = int_to_ptr.vmem [resolvable:$true] %s550
      %s552 = sshll.u32 %s7, 4
      %s553 = int_to_ptr.hbm [resolvable:$true] %s552
      %555 = dma.vmem_to_hbm [thread:$0]  %s551, 16, %s553, [#allocation4]
    $region33: #{tpu_custom_call.1} parent=1 // pred_fallthru
      _
    // Predicated region
    $region34: #{tpu_custom_call.1} parent=1 // pred_check
      _
    $region35: #{tpu_custom_call.1} parent=1 // pred_check_branch
      %557 = sbr.rel (0) target = $region37
    $region36: #{tpu_custom_call.1} parent=1 // pred_region
      %559 = dma.done [#allocation4], 16
    $region37: #{tpu_custom_call.1} parent=1 // pred_fallthru
      _
    %560 = vsyncpa [#allocation4], 1

</llo_original>
